<compile_context>
chip_gen: v5e
topology: v5e:2x2
jax: 0.10.0
libtpu: 0.0.40
codegen_flags: <defaults>
</compile_context>

<pallas_src>
import jax
import jax.numpy as jnp
from jax.experimental import pallas as pl
from jax.experimental.pallas import tpu as pltpu

BN_EPS = 1e-5
VMEM_LIMIT_BYTES = 32 * 1024 * 1024   # explicit scoped-VMEM limit, safe on v5e/v6e/v7x


def _round_up(x, m):
    return (x + m - 1) // m * m


# ---------------------------------------------------------------------------
# Kernel A: ReLU + im2col conv matmul + per-tile partial BN statistics.
#   p_ref     : [tm, Kp]    bf16 im2col patch tile (zero-padded rows/cols)
#   w_ref     : [Kp, Cp]    bf16 reshaped conv weight (zero-padded)
#   y_ref     : [tm, Cp]    f32  un-normalized conv output tile
#   pstats_ref: [1, 2, Cp]  f32  this tile's [sum; sum of squares]
def _relu_conv_stats_kernel(p_ref, w_ref, y_ref, pstats_ref):
    # ReLU is elementwise, idempotent and maps 0 -> 0, so applying it to the
    # gathered (zero-padded) patches equals ReLU before the conv.
    x = jnp.maximum(p_ref[...], 0)
    # Single MXU matmul with K = 9*Cin (instead of 9 tiny K=Cin matmuls).
    y = jnp.dot(x, w_ref[...], preferred_element_type=jnp.float32)
    y_ref[...] = y

    # Per-tile partial BN statistics; padded rows are all-zero and contribute 0.
    pstats_ref[0, 0:1, :] = jnp.sum(y, axis=0, keepdims=True)
    pstats_ref[0, 1:2, :] = jnp.sum(y * y, axis=0, keepdims=True)


# ---------------------------------------------------------------------------
# Kernel B: apply the pre-folded BatchNorm scale/shift (pure FMA on the VPU).
#   y_ref    : [tm, Cp] f32
#   scale_ref: [1,  Cp] f32   gamma * rsqrt(var + eps)
#   shift_ref: [1,  Cp] f32   beta - mean * scale
def _bn_apply_kernel(y_ref, scale_ref, shift_ref, o_ref):
    o_ref[...] = y_ref[...] * scale_ref[...] + shift_ref[...]


# ---------------------------------------------------------------------------
# Plain-JAX glue: bilinear resize with align_corners=True (matches
# F.interpolate(..., mode='bilinear', align_corners=True)).
def _scale_dimension(dim, scale):
    return int((float(dim) - 1.0) * scale + 1.0) if dim % 2 == 1 else int(float(dim) * scale)


def _bilinear_resize_align_corners(x_nchw, out_h, out_w):
    # TODO(synk): gather-based bilinear resize stays in plain JAX (no clean
    # rectangular-tile Pallas pattern at these tiny shapes).
    N, C, H, W = x_nchw.shape
    if (out_h, out_w) == (H, W):
        return x_nchw

    def coords(out_dim, in_dim):
        if out_dim == 1:
            return jnp.zeros((1,), jnp.float32)
        return jnp.linspace(0.0, float(in_dim - 1), out_dim)

    ys = coords(out_h, H)
    xs = coords(out_w, W)
    y0 = jnp.floor(ys).astype(jnp.int32)
    y1 = jnp.minimum(y0 + 1, H - 1)
    wy = ys - y0.astype(jnp.float32)
    x0 = jnp.floor(xs).astype(jnp.int32)
    x1 = jnp.minimum(x0 + 1, W - 1)
    wx = xs - x0.astype(jnp.float32)

    top = x_nchw[:, :, y0, :]
    bot = x_nchw[:, :, y1, :]
    rows = top * (1.0 - wy)[None, None, :, None] + bot * wy[None, None, :, None]
    left = rows[:, :, :, x0]
    right = rows[:, :, :, x1]
    return left * (1.0 - wx)[None, None, None, :] + right * wx[None, None, None, :]


# ---------------------------------------------------------------------------
def relu_conv_bn(x_nchw, w_oihw, gamma, beta):
    """Forward pass of ReLUConvBN. x_nchw: [N, C_in, H, W] (PyTorch layout)."""
    N, C_in, H, W = x_nchw.shape
    C_out = w_oihw.shape[0]
    scale = C_in / C_out

    if scale != 0:  # matches the PyTorch guard; resize is identity when target == source
        new_h = _scale_dimension(H, scale)
        new_w = _scale_dimension(W, scale)
        x_nchw = _bilinear_resize_align_corners(x_nchw, new_h, new_w)

    Hh, Ww = x_nchw.shape[2], x_nchw.shape[3]

    # ---- XLA layout glue: NCHW -> NHWC, halo pad, im2col patch matrix -------
    x_nhwc = jnp.transpose(x_nchw, (0, 2, 3, 1)).astype(jnp.float32)
    x_pad = jnp.pad(x_nhwc, ((0, 0), (1, 1), (1, 1), (0, 0)))
    patches = jnp.concatenate(
        [x_pad[:, kh:kh + Hh, kw:kw + Ww, :] for kh in range(3) for kw in range(3)],
        axis=-1)                                        # [N, Hh, Ww, 9*Cin], (kh,kw,cin) order
    M = N * Hh * Ww
    K = 9 * C_in
    patches = patches.reshape(M, K)

    # ---- pad to MXU / lane friendly shapes -----------------------------------
    tm = min(256, _round_up(M, 8))          # row tile (sublane multiple)
    Mp = _round_up(M, tm)                   # padded rows contribute 0 to BN stats
    Kp = _round_up(K, 8)                    # contraction dim; equals full array dim
    Cp = _round_up(C_out, 128)              # lane-dense matmul-N / output last dim
    G = Mp // tm

    patches = jnp.pad(patches, ((0, Mp - M), (0, Kp - K))).astype(jnp.bfloat16)
    # weight reshape in the wrapper: [Cout,Cin,3,3] -> [(kh,kw,cin), Cout]
    w_mat = jnp.transpose(w_oihw, (2, 3, 1, 0)).reshape(K, C_out)
    w_mat = jnp.pad(w_mat, ((0, Kp - K), (0, Cp - C_out))).astype(jnp.bfloat16)
    gamma_p = jnp.pad(gamma.astype(jnp.float32), (0, Cp - C_out))
    beta_p = jnp.pad(beta.astype(jnp.float32), (0, Cp - C_out))

    grid = (G,)

    # ---- kernel A: ReLU + conv matmul + per-tile partial stats ---------------
    y, pstats = pl.pallas_call(
        _relu_conv_stats_kernel,
        out_shape=(jax.ShapeDtypeStruct((Mp, Cp), jnp.float32),
                   jax.ShapeDtypeStruct((G, 2, Cp), jnp.float32)),
        grid_spec=pltpu.PrefetchScalarGridSpec(
            num_scalar_prefetch=0,
            grid=grid,
            in_specs=[pl.BlockSpec((tm, Kp), lambda i: (i, 0)),
                      pl.BlockSpec((Kp, Cp), lambda i: (0, 0))],
            out_specs=(pl.BlockSpec((tm, Cp), lambda i: (i, 0)),
                       pl.BlockSpec((1, 2, Cp), lambda i: (i, 0, 0)))),
        compiler_params=pltpu.CompilerParams(
            dimension_semantics=("parallel",),      # no cross-step carry -> megacore OK
            vmem_limit_bytes=VMEM_LIMIT_BYTES),
    )(patches, w_mat)

    # ---- tiny XLA epilogue: fold global batch stats + gamma/beta -------------
    stats = jnp.sum(pstats, axis=0)                  # [2, Cp]
    mean = stats[0] / M
    var = stats[1] / M - mean * mean                 # one-pass variance
    inv = jax.lax.rsqrt(var + BN_EPS)
    bn_scale = (gamma_p * inv).reshape(1, Cp)
    bn_shift = (beta_p - mean * gamma_p * inv).reshape(1, Cp)

    # ---- kernel B: normalize (pure FMA, lane-dense) ---------------------------
    out_flat = pl.pallas_call(
        _bn_apply_kernel,
        out_shape=jax.ShapeDtypeStruct((Mp, Cp), jnp.float32),
        grid_spec=pltpu.PrefetchScalarGridSpec(
            num_scalar_prefetch=0,
            grid=grid,
            in_specs=[pl.BlockSpec((tm, Cp), lambda i: (i, 0)),
                      pl.BlockSpec((1, Cp), lambda i: (0, 0)),
                      pl.BlockSpec((1, Cp), lambda i: (0, 0))],
            out_specs=pl.BlockSpec((tm, Cp), lambda i: (i, 0))),
        compiler_params=pltpu.CompilerParams(
            dimension_semantics=("parallel",),
            vmem_limit_bytes=VMEM_LIMIT_BYTES),
    )(y, bn_scale, bn_shift)

    out_nhwc = out_flat[:M, :C_out].reshape(N, Hh, Ww, C_out)
    # TODO(synk): final NHWC->NCHW transpose kept only for PyTorch-layout parity;
    # drop it if the downstream consumer accepts NHWC.
    return jnp.transpose(out_nhwc, (0, 3, 1, 2))


if __name__ == "__main__":
    key = jax.random.PRNGKey(0)
    k_x, k_w = jax.random.split(key)

    N, C_in, C_out, H, W = 2, 4, 8, 16, 16

    x = jax.random.normal(k_x, (N, C_in, H, W), jnp.float32)

    # Conv2d weight [C_out, C_in, 3, 3] with kaiming_normal_ (fan_in, gain=sqrt(2))
    fan_in = C_in * 3 * 3
    std = (2.0 / fan_in) ** 0.5
    w = jax.random.normal(k_w, (C_out, C_in, 3, 3), jnp.float32) * std

    # BatchNorm2d affine params: weight filled with 1, bias zeroed
    gamma = jnp.ones((C_out,), jnp.float32)
    beta = jnp.zeros((C_out,), jnp.float32)

    out = jax.jit(relu_conv_bn)(x, w, gamma, beta)
    jax.block_until_ready(out)

    # scale = 4/8 = 0.5 -> spatial 16x16 resized to 8x8 before the conv
    assert out.shape == (N, C_out, 8, 8), out.shape
    print("KERNEL_OK")
</pallas_src>

<mosaic_0001>
module attributes {stable_mosaic.version = 11 : i64} {
  func.func @_relu_conv_stats_kernel(%arg0: i32, %arg1: memref<128x40xbf16, #tpu.memory_space<vmem>>, %arg2: memref<40x128xbf16, #tpu.memory_space<vmem>>, %arg3: memref<128x128xf32, #tpu.memory_space<vmem>>, %arg4: memref<1x2x128xf32, #tpu.memory_space<vmem>>) attributes {dimension_semantics = [#tpu.dimension_semantics<parallel>], iteration_bounds = array<i64: 1>, scalar_prefetch = 0 : i64, scratch_operands = 0 : i64, tpu.core_type = #tpu.core_type<tc>, window_params = [{transform_indices = @transform_0, window_bounds = array<i64: 128, 40>}, {pipeline_mode = #tpu.pipeline_mode<synchronous>, transform_indices = @transform_1, window_bounds = array<i64: 40, 128>}, {transform_indices = @transform_2, window_bounds = array<i64: 128, 128>}, {transform_indices = @transform_3, window_bounds = array<i64: 1, 2, 128>}]} {
    %c0 = arith.constant 0 : index
    %c0_0 = arith.constant 0 : index
    %0 = vector.load %arg1[%c0, %c0_0] : memref<128x40xbf16, #tpu.memory_space<vmem>>, vector<128x40xbf16>
    %cst = arith.constant 0.000000e+00 : bf16
    %1 = vector.broadcast %cst : bf16 to vector<128x40xbf16>
    %2 = arith.maximumf %0, %1 : vector<128x40xbf16>
    %c0_1 = arith.constant 0 : index
    %c0_2 = arith.constant 0 : index
    %3 = vector.load %arg2[%c0_1, %c0_2] : memref<40x128xbf16, #tpu.memory_space<vmem>>, vector<40x128xbf16>
    %cst_3 = arith.constant dense<0.000000e+00> : vector<128x128xf32>
    %4 = tpu.matmul %2, %3, %cst_3 {dimension_numbers = #tpu.dot_dimension_numbers<[1], [0], [0], [1], [0, 0, 1, 1], [], []>} : vector<128x40xbf16>, vector<40x128xbf16>, vector<128x128xf32> -> vector<128x128xf32>
    %c0_4 = arith.constant 0 : index
    %c0_5 = arith.constant 0 : index
    %5 = vector.load %arg3[%c0_4, %c0_5] : memref<128x128xf32, #tpu.memory_space<vmem>>, vector<128x128xf32>
    tpu.vector_store %arg3[%c0_4, %c0_5], %4 {strides = array<i32>} : memref<128x128xf32, #tpu.memory_space<vmem>>, vector<128x128xf32>,
    %cst_6 = arith.constant dense<0.000000e+00> : vector<128xf32>
    %6 = vector.multi_reduction <add>, %4, %cst_6 [0] : vector<128x128xf32> to vector<128xf32>
    %7 = vector.shape_cast %6 : vector<128xf32> to vector<1x128xf32>
    %c0_7 = arith.constant 0 : index
    %c0_8 = arith.constant 0 : index
    %c0_9 = arith.constant 0 : index
    %8 = vector.load %arg4[%c0_7, %c0_8, %c0_9] : memref<1x2x128xf32, #tpu.memory_space<vmem>>, vector<1x1x128xf32>
    %9 = vector.shape_cast %8 : vector<1x1x128xf32> to vector<1x128xf32>
    %10 = vector.shape_cast %7 : vector<1x128xf32> to vector<1x1x128xf32>
    tpu.vector_store %arg4[%c0_7, %c0_8, %c0_9], %10 {strides = array<i32>} : memref<1x2x128xf32, #tpu.memory_space<vmem>>, vector<1x1x128xf32>,
    %11 = arith.mulf %4, %4 : vector<128x128xf32>
    %cst_10 = arith.constant dense<0.000000e+00> : vector<128xf32>
    %12 = vector.multi_reduction <add>, %11, %cst_10 [0] : vector<128x128xf32> to vector<128xf32>
    %13 = vector.shape_cast %12 : vector<128xf32> to vector<1x128xf32>
    %c0_11 = arith.constant 0 : index
    %c1 = arith.constant 1 : index
    %c0_12 = arith.constant 0 : index
    %14 = vector.load %arg4[%c0_11, %c1, %c0_12] : memref<1x2x128xf32, #tpu.memory_space<vmem>>, vector<1x1x128xf32>
    %15 = vector.shape_cast %14 : vector<1x1x128xf32> to vector<1x128xf32>
    %16 = vector.shape_cast %13 : vector<1x128xf32> to vector<1x1x128xf32>
    tpu.vector_store %arg4[%c0_11, %c1, %c0_12], %16 {strides = array<i32>} : memref<1x2x128xf32, #tpu.memory_space<vmem>>, vector<1x1x128xf32>,
    return
  }
  func.func @transform_0(%arg0: i32) -> (i32, i32) {
    %c0_i32 = arith.constant 0 : i32
    %c0_i32_0 = arith.constant 0 : i32
    return %arg0, %c0_i32 : i32, i32
  }
  func.func @transform_1(%arg0: i32) -> (i32, i32) {
    %c0_i32 = arith.constant 0 : i32
    %c0_i32_0 = arith.constant 0 : i32
    %c0_i32_1 = arith.constant 0 : i32
    return %c0_i32, %c0_i32_0 : i32, i32
  }
  func.func @transform_2(%arg0: i32) -> (i32, i32) {
    %c0_i32 = arith.constant 0 : i32
    %c0_i32_0 = arith.constant 0 : i32
    return %arg0, %c0_i32 : i32, i32
  }
  func.func @transform_3(%arg0: i32) -> (i32, i32, i32) {
    %c0_i32 = arith.constant 0 : i32
    %c0_i32_0 = arith.constant 0 : i32
    %c0_i32_1 = arith.constant 0 : i32
    return %arg0, %c0_i32, %c0_i32_0 : i32, i32, i32
  }
}

module attributes {stable_mosaic.version = 11 : i64} {
  func.func @_bn_apply_kernel(%arg0: i32, %arg1: memref<128x128xf32, #tpu.memory_space<vmem>>, %arg2: memref<1x128xf32, #tpu.memory_space<vmem>>, %arg3: memref<1x128xf32, #tpu.memory_space<vmem>>, %arg4: memref<128x128xf32, #tpu.memory_space<vmem>>) attributes {dimension_semantics = [#tpu.dimension_semantics<parallel>], iteration_bounds = array<i64: 1>, scalar_prefetch = 0 : i64, scratch_operands = 0 : i64, tpu.core_type = #tpu.core_type<tc>, window_params = [{transform_indices = @transform_0, window_bounds = array<i64: 128, 128>}, {pipeline_mode = #tpu.pipeline_mode<synchronous>, transform_indices = @transform_1, window_bounds = array<i64: 1, 128>}, {pipeline_mode = #tpu.pipeline_mode<synchronous>, transform_indices = @transform_2, window_bounds = array<i64: 1, 128>}, {transform_indices = @transform_3, window_bounds = array<i64: 128, 128>}]} {
    %c0 = arith.constant 0 : index
    %c0_0 = arith.constant 0 : index
    %0 = vector.load %arg1[%c0, %c0_0] : memref<128x128xf32, #tpu.memory_space<vmem>>, vector<128x128xf32>
    %c0_1 = arith.constant 0 : index
    %c0_2 = arith.constant 0 : index
    %1 = vector.load %arg2[%c0_1, %c0_2] : memref<1x128xf32, #tpu.memory_space<vmem>>, vector<1x128xf32>
    %2 = vector.broadcast %1 : vector<1x128xf32> to vector<128x128xf32>
    %3 = arith.mulf %0, %2 : vector<128x128xf32>
    %c0_3 = arith.constant 0 : index
    %c0_4 = arith.constant 0 : index
    %4 = vector.load %arg3[%c0_3, %c0_4] : memref<1x128xf32, #tpu.memory_space<vmem>>, vector<1x128xf32>
    %5 = vector.broadcast %4 : vector<1x128xf32> to vector<128x128xf32>
    %6 = arith.addf %3, %5 : vector<128x128xf32>
    %c0_5 = arith.constant 0 : index
    %c0_6 = arith.constant 0 : index
    %7 = vector.load %arg4[%c0_5, %c0_6] : memref<128x128xf32, #tpu.memory_space<vmem>>, vector<128x128xf32>
    tpu.vector_store %arg4[%c0_5, %c0_6], %6 {strides = array<i32>} : memref<128x128xf32, #tpu.memory_space<vmem>>, vector<128x128xf32>,
    return
  }
  func.func @transform_0(%arg0: i32) -> (i32, i32) {
    %c0_i32 = arith.constant 0 : i32
    %c0_i32_0 = arith.constant 0 : i32
    return %arg0, %c0_i32 : i32, i32
  }
  func.func @transform_1(%arg0: i32) -> (i32, i32) {
    %c0_i32 = arith.constant 0 : i32
    %c0_i32_0 = arith.constant 0 : i32
    %c0_i32_1 = arith.constant 0 : i32
    return %c0_i32, %c0_i32_0 : i32, i32
  }
  func.func @transform_2(%arg0: i32) -> (i32, i32) {
    %c0_i32 = arith.constant 0 : i32
    %c0_i32_0 = arith.constant 0 : i32
    %c0_i32_1 = arith.constant 0 : i32
    return %c0_i32, %c0_i32_0 : i32, i32
  }
  func.func @transform_3(%arg0: i32) -> (i32, i32) {
    %c0_i32 = arith.constant 0 : i32
    %c0_i32_0 = arith.constant 0 : i32
    return %arg0, %c0_i32 : i32, i32
  }
}

</mosaic_0001>

<llo_original>
// kernel: relu_conv_bn.2
$region0: #{relu_conv_bn.2}
  #allocation0 [shape = 'u32[]', space=smem, size = 0x4, offset = 0x4, fixed_abs, tag = 'smem constant byte address 0x4 - core index']
  #allocation1 [shape = 'u32[72,128]{1,0:T(1,128)}', space=vmem, size = 0x9000, scoped, tag = 'internal scratch']
  %s0 = inlined_call_operand.vmem [shape: bf16[128,40], index: 0, kind: input, shape index: {}]
  %s1 = inlined_call_operand.vmem [shape: bf16[40,128], index: 1, kind: input, shape index: {}]
  %s2 = inlined_call_operand.vmem [shape: f32[128,128], index: 2, kind: output, shape index: {0}]
  %s3 = inlined_call_operand.vmem [shape: f32[1,2,128], index: 3, kind: output, shape index: {1}]
  %4 = xla_tuple %s2, %s3
  %s5 = sld [smem:[#allocation0]]
  $region26: #{relu_conv_bn.2} parent=0
    _
  %s7 = ssub.s32 1, %s5
  %s8 = scalar_select 0, %s7, %s5
  // Predicated region
  $region2: #{relu_conv_bn.2} parent=0 // pred_check
    _
  $region3: #{relu_conv_bn.2} parent=0 // pred_check_branch
    %10 = sbr.rel (0) target = $region5
  $region4: #{relu_conv_bn.2} parent=0 // pred_region
    _
  $region5: #{relu_conv_bn.2} parent=0 // pred_fallthru
    _
  // Predicated region
  $region6: #{relu_conv_bn.2} parent=0 // pred_check
    _
  $region7: #{relu_conv_bn.2} parent=0 // pred_check_branch
    %12 = sbr.rel (0) target = $region9
  $region8: #{relu_conv_bn.2} parent=0 // pred_region
    _
  $region9: #{relu_conv_bn.2} parent=0 // pred_fallthru
    _
  %v14 = vld [vmem:[%s0] sm:$0xf]
  %v15 = vld [vmem:[%s0 + $0x4] sm:$0xf]
  %v16 = vld [vmem:[%s0 + $0x8] sm:$0xf]
  %v17 = vld [vmem:[%s0 + $0xc] sm:$0xf]
  %v18 = vld [vmem:[%s0 + $0x10] sm:$0xf]
  %v19 = vld [vmem:[%s0 + $0x14] sm:$0xf]
  %v20 = vld [vmem:[%s0 + $0x18] sm:$0xf]
  %v21 = vld [vmem:[%s0 + $0x1c] sm:$0xf]
  %v22 = vld [vmem:[%s0 + $0x20] sm:$0xf]
  %v23 = vld [vmem:[%s0 + $0x24] sm:$0xf]
  %v24 = vld [vmem:[%s0 + $0x28] sm:$0xf]
  %v25 = vld [vmem:[%s0 + $0x2c] sm:$0xf]
  %v26 = vld [vmem:[%s0 + $0x30] sm:$0xf]
  %v27 = vld [vmem:[%s0 + $0x34] sm:$0xf]
  %v28 = vld [vmem:[%s0 + $0x38] sm:$0xf]
  %v29 = vld [vmem:[%s0 + $0x3c] sm:$0xf]
  %v30 = vunpack.c.l.bf16 %v14
  %v31 = vunpack.c.l.bf16 %v15
  %v32 = vunpack.c.l.bf16 %v16
  %v33 = vunpack.c.l.bf16 %v17
  %v34 = vunpack.c.l.bf16 %v18
  %v35 = vunpack.c.l.bf16 %v19
  %v36 = vunpack.c.l.bf16 %v20
  %v37 = vunpack.c.l.bf16 %v21
  %v38 = vunpack.c.l.bf16 %v22
  %v39 = vunpack.c.l.bf16 %v23
  %v40 = vunpack.c.l.bf16 %v24
  %v41 = vunpack.c.l.bf16 %v25
  %v42 = vunpack.c.l.bf16 %v26
  %v43 = vunpack.c.l.bf16 %v27
  %v44 = vunpack.c.l.bf16 %v28
  %v45 = vunpack.c.l.bf16 %v29
  %v46 = vmax.f32 %v30, 0.0
  %v47 = vmax.f32 %v31, 0.0
  %v48 = vmax.f32 %v32, 0.0
  %v49 = vmax.f32 %v33, 0.0
  %v50 = vmax.f32 %v34, 0.0
  %v51 = vmax.f32 %v35, 0.0
  %v52 = vmax.f32 %v36, 0.0
  %v53 = vmax.f32 %v37, 0.0
  %v54 = vmax.f32 %v38, 0.0
  %v55 = vmax.f32 %v39, 0.0
  %v56 = vmax.f32 %v40, 0.0
  %v57 = vmax.f32 %v41, 0.0
  %v58 = vmax.f32 %v42, 0.0
  %v59 = vmax.f32 %v43, 0.0
  %v60 = vmax.f32 %v44, 0.0
  %v61 = vmax.f32 %v45, 0.0
  %v62 = vpack.c.bf16 %v47, %v46
  %v63 = vpack.c.bf16 %v49, %v48
  %v64 = vpack.c.bf16 %v51, %v50
  %v65 = vpack.c.bf16 %v53, %v52
  %v66 = vpack.c.bf16 %v55, %v54
  %v67 = vpack.c.bf16 %v57, %v56
  %v68 = vpack.c.bf16 %v59, %v58
  %v69 = vpack.c.bf16 %v61, %v60
  %v70 = vld [vmem:[%s1] sm:$0xf]
  %v71 = vld [vmem:[%s1 + $0x4] sm:$0xf]
  %v72 = vld [vmem:[%s1 + $0x8] sm:$0xf]
  %v73 = vld [vmem:[%s1 + $0xc] sm:$0xf]
  %v74 = vld [vmem:[%s1 + $0x10] sm:$0xf]
  %v80 = vunpack.c.l.b16 %v70
  %v81 = vunpack.c.l.b16 %v71
  %v82 = vunpack.c.l.b16 %v72
  %v83 = vunpack.c.l.b16 %v73
  %v84 = vunpack.c.l.b16 %v74
  %v85 = vpack.c.b16 %v81, %v80
  %v86 = vpack.c.b16 %v83, %v82
  %v87 = vpack.c.b16 %v84, %v84
  %vm90 = vcmask 326656
  %v92 = vsel %vm90, %v62, 0
  %v95 = vsel %vm90, %v63, 0
  %v98 = vsel %vm90, %v64, 0
  %v101 = vsel %vm90, %v65, 0
  %v104 = vsel %vm90, %v66, 0
  %v107 = vsel %vm90, %v67, 0
  %v110 = vsel %vm90, %v68, 0
  %v113 = vsel %vm90, %v69, 0
  %vm115 = vcmask 1043456
  %v117 = vsel %vm115, %v87, 0
  %119 = vmatpush.bf16.msra.mxu0 0
  %120 = vmatpush.bf16.msra.mxu0 0
  %121 = vmatpush.bf16.msra.mxu0 0
  %122 = vmatpush.bf16.msra.mxu0 0
  %123 = vmatpush.bf16.msra.mxu0 0
  %124 = vmatpush.bf16.msra.mxu0 %v117
  %125 = vmatpush.bf16.msra.mxu0 %v86
  %126 = vmatpush.bf16.msra.mxu0 %v85
  %127 = vmatmul.bf16.gmra.mxu0 %v92
  %v128 = vpop.f32.mrf.mxu0
  %v129 = vadd.f32 0.0, %v128
  %v130 = vpop.f32.mrf.mxu0
  %v131 = vadd.f32 0.0, %v130
  %132 = vmatmul.bf16.gmra.mxu0 %v95
  %v133 = vpop.f32.mrf.mxu0
  %v134 = vadd.f32 0.0, %v133
  %v135 = vpop.f32.mrf.mxu0
  %v136 = vadd.f32 0.0, %v135
  %137 = vmatmul.bf16.gmra.mxu0 %v98
  %v138 = vpop.f32.mrf.mxu0
  %v139 = vadd.f32 0.0, %v138
  %v140 = vpop.f32.mrf.mxu0
  %v141 = vadd.f32 0.0, %v140
  %142 = vmatmul.bf16.gmra.mxu0 %v101
  %v143 = vpop.f32.mrf.mxu0
  %v144 = vadd.f32 0.0, %v143
  %v145 = vpop.f32.mrf.mxu0
  %v146 = vadd.f32 0.0, %v145
  %147 = vmatmul.bf16.gmra.mxu0 %v104
  %v148 = vpop.f32.mrf.mxu0
  %v149 = vadd.f32 0.0, %v148
  %v150 = vpop.f32.mrf.mxu0
  %v151 = vadd.f32 0.0, %v150
  %152 = vmatmul.bf16.gmra.mxu0 %v107
  %v153 = vpop.f32.mrf.mxu0
  %v154 = vadd.f32 0.0, %v153
  %v155 = vpop.f32.mrf.mxu0
  %v156 = vadd.f32 0.0, %v155
  %157 = vmatmul.bf16.gmra.mxu0 %v110
  %v158 = vpop.f32.mrf.mxu0
  %v159 = vadd.f32 0.0, %v158
  %v160 = vpop.f32.mrf.mxu0
  %v161 = vadd.f32 0.0, %v160
  %162 = vmatmul.bf16.gmra.mxu0 %v113
  %v163 = vpop.f32.mrf.mxu0
  %v164 = vadd.f32 0.0, %v163
  %v165 = vpop.f32.mrf.mxu0
  %v166 = vadd.f32 0.0, %v165
  %167 = vdwg.mxu0
  %168 = vst [vmem:[%s2] sm:$0xff] %v129
  %169 = vst [vmem:[%s2 + $0x8] sm:$0xff] %v131
  %170 = vst [vmem:[%s2 + $0x10] sm:$0xff] %v134
  %171 = vst [vmem:[%s2 + $0x18] sm:$0xff] %v136
  %172 = vst [vmem:[%s2 + $0x20] sm:$0xff] %v139
  %173 = vst [vmem:[%s2 + $0x28] sm:$0xff] %v141
  %174 = vst [vmem:[%s2 + $0x30] sm:$0xff] %v144
  %175 = vst [vmem:[%s2 + $0x38] sm:$0xff] %v146
  %176 = vst [vmem:[%s2 + $0x40] sm:$0xff] %v149
  %177 = vst [vmem:[%s2 + $0x48] sm:$0xff] %v151
  %178 = vst [vmem:[%s2 + $0x50] sm:$0xff] %v154
  %179 = vst [vmem:[%s2 + $0x58] sm:$0xff] %v156
  %180 = vst [vmem:[%s2 + $0x60] sm:$0xff] %v159
  %181 = vst [vmem:[%s2 + $0x68] sm:$0xff] %v161
  %182 = vst [vmem:[%s2 + $0x70] sm:$0xff] %v164
  %183 = vst [vmem:[%s2 + $0x78] sm:$0xff] %v166
  %v184 = vadd.f32 %v129, %v131
  %v185 = vadd.f32 %v184, %v134
  %v186 = vadd.f32 %v185, %v136
  %v187 = vadd.f32 %v186, %v139
  %v188 = vadd.f32 %v187, %v141
  %v189 = vadd.f32 %v188, %v144
  %v190 = vadd.f32 %v189, %v146
  %v191 = vadd.f32 %v190, %v149
  %v192 = vadd.f32 %v191, %v151
  %v193 = vadd.f32 %v192, %v154
  %v194 = vadd.f32 %v193, %v156
  %v195 = vadd.f32 %v194, %v159
  %v196 = vadd.f32 %v195, %v161
  %v197 = vadd.f32 %v196, %v164
  %v198 = vadd.f32 %v197, %v166
  %v199 = vrot.slane %v198, 4
  %v200 = vadd.f32 %v198, %v199
  %v201 = vrot.slane %v200, 2
  %v202 = vadd.f32 %v200, %v201
  %v203 = vrot.slane %v202, 1
  %v204 = vadd.f32 %v202, %v203
  %205 = vst [vmem:[%s3] sm:$0x1] %v204
  %v206 = vmul.f32 %v129, %v129
  %v207 = vmul.f32 %v131, %v131
  %v208 = vmul.f32 %v134, %v134
  %v209 = vmul.f32 %v136, %v136
  %v210 = vmul.f32 %v139, %v139
  %v211 = vmul.f32 %v141, %v141
  %v212 = vmul.f32 %v144, %v144
  %v213 = vmul.f32 %v146, %v146
  %v214 = vmul.f32 %v149, %v149
  %v215 = vmul.f32 %v151, %v151
  %v216 = vmul.f32 %v154, %v154
  %v217 = vmul.f32 %v156, %v156
  %v218 = vmul.f32 %v159, %v159
  %v219 = vmul.f32 %v161, %v161
  %v220 = vmul.f32 %v164, %v164
  %v221 = vmul.f32 %v166, %v166
  %v222 = vadd.f32 %v206, %v207
  %v223 = vadd.f32 %v222, %v208
  %v224 = vadd.f32 %v223, %v209
  %v225 = vadd.f32 %v224, %v210
  %v226 = vadd.f32 %v225, %v211
  %v227 = vadd.f32 %v226, %v212
  %v228 = vadd.f32 %v227, %v213
  %v229 = vadd.f32 %v228, %v214
  %v230 = vadd.f32 %v229, %v215
  %v231 = vadd.f32 %v230, %v216
  %v232 = vadd.f32 %v231, %v217
  %v233 = vadd.f32 %v232, %v218
  %v234 = vadd.f32 %v233, %v219
  %v235 = vadd.f32 %v234, %v220
  %v236 = vadd.f32 %v235, %v221
  %v237 = vrot.slane %v236, 4
  %v238 = vadd.f32 %v236, %v237
  %v239 = vrot.slane %v238, 2
  %v240 = vadd.f32 %v238, %v239
  %v241 = vrot.slane %v240, 1
  %v242 = vadd.f32 %v240, %v241
  %243 = vst [vmem:[%s3 + $0x1] sm:$0x1] %v242
  // Predicated region
  $region10: #{relu_conv_bn.2} parent=0 // pred_check
    _
  $region11: #{relu_conv_bn.2} parent=0 // pred_check_branch
    %245 = sbr.rel (0) target = $region13
  $region12: #{relu_conv_bn.2} parent=0 // pred_region
    _
  $region13: #{relu_conv_bn.2} parent=0 // pred_fallthru
    _
  // Predicated region
  $region14: #{relu_conv_bn.2} parent=0 // pred_check
    _
  $region15: #{relu_conv_bn.2} parent=0 // pred_check_branch
    %247 = sbr.rel (0) target = $region17
  $region16: #{relu_conv_bn.2} parent=0 // pred_region
    _
  $region17: #{relu_conv_bn.2} parent=0 // pred_fallthru
    _
  // Predicated region
  $region18: #{relu_conv_bn.2} parent=0 // pred_check
    _
  $region19: #{relu_conv_bn.2} parent=0 // pred_check_branch
    %249 = sbr.rel (0) target = $region21
  $region20: #{relu_conv_bn.2} parent=0 // pred_region
    _
  $region21: #{relu_conv_bn.2} parent=0 // pred_fallthru
    _
  // Predicated region
  $region22: #{relu_conv_bn.2} parent=0 // pred_check
    _
  $region23: #{relu_conv_bn.2} parent=0 // pred_check_branch
    %251 = sbr.rel (0) target = $region25
  $region24: #{relu_conv_bn.2} parent=0 // pred_region
    _
  $region25: #{relu_conv_bn.2} parent=0 // pred_fallthru
    _

// kernel: relu_conv_bn.3
$region0: #{relu_conv_bn.3}
  #allocation0 [shape = 'u32[]', space=smem, size = 0x4, offset = 0x4, fixed_abs, tag = 'smem constant byte address 0x4 - core index']
  #allocation1 [shape = 'u32[72,128]{1,0:T(1,128)}', space=vmem, size = 0x9000, scoped, tag = 'internal scratch']
  %s0 = inlined_call_operand.vmem [shape: f32[128,128], index: 0, kind: input, shape index: {}]
  %s1 = inlined_call_operand.vmem [shape: f32[1,128], index: 1, kind: input, shape index: {}]
  %s2 = inlined_call_operand.vmem [shape: f32[1,128], index: 2, kind: input, shape index: {}]
  %s3 = inlined_call_operand.vmem [shape: f32[128,128], index: 3, kind: output, shape index: {}]
  %s4 = sld [smem:[#allocation0]]
  $region22: #{relu_conv_bn.3} parent=0
    _
  %s6 = ssub.s32 1, %s4
  %s7 = scalar_select 0, %s6, %s4
  // Predicated region
  $region2: #{relu_conv_bn.3} parent=0 // pred_check
    _
  $region3: #{relu_conv_bn.3} parent=0 // pred_check_branch
    %9 = sbr.rel (0) target = $region5
  $region4: #{relu_conv_bn.3} parent=0 // pred_region
    _
  $region5: #{relu_conv_bn.3} parent=0 // pred_fallthru
    _
  // Predicated region
  $region6: #{relu_conv_bn.3} parent=0 // pred_check
    _
  $region7: #{relu_conv_bn.3} parent=0 // pred_check_branch
    %11 = sbr.rel (0) target = $region9
  $region8: #{relu_conv_bn.3} parent=0 // pred_region
    _
  $region9: #{relu_conv_bn.3} parent=0 // pred_fallthru
    _
  // Predicated region
  $region10: #{relu_conv_bn.3} parent=0 // pred_check
    _
  $region11: #{relu_conv_bn.3} parent=0 // pred_check_branch
    %13 = sbr.rel (0) target = $region13
  $region12: #{relu_conv_bn.3} parent=0 // pred_region
    _
  $region13: #{relu_conv_bn.3} parent=0 // pred_fallthru
    _
  %v14 = vld [vmem:[%s0] sm:$0xff]
  %v15 = vld [vmem:[%s0 + $0x8] sm:$0xff]
  %v16 = vld [vmem:[%s0 + $0x10] sm:$0xff]
  %v17 = vld [vmem:[%s0 + $0x18] sm:$0xff]
  %v18 = vld [vmem:[%s0 + $0x20] sm:$0xff]
  %v19 = vld [vmem:[%s0 + $0x28] sm:$0xff]
  %v20 = vld [vmem:[%s0 + $0x30] sm:$0xff]
  %v21 = vld [vmem:[%s0 + $0x38] sm:$0xff]
  %v22 = vld [vmem:[%s0 + $0x40] sm:$0xff]
  %v23 = vld [vmem:[%s0 + $0x48] sm:$0xff]
  %v24 = vld [vmem:[%s0 + $0x50] sm:$0xff]
  %v25 = vld [vmem:[%s0 + $0x58] sm:$0xff]
  %v26 = vld [vmem:[%s0 + $0x60] sm:$0xff]
  %v27 = vld [vmem:[%s0 + $0x68] sm:$0xff]
  %v28 = vld [vmem:[%s0 + $0x70] sm:$0xff]
  %v29 = vld [vmem:[%s0 + $0x78] sm:$0xff]
  %v30 = vld [vmem:[%s1] sm:$0x1]
  %v32 = vperm.slane %v30, 0
  %v34 = vmul.f32 %v14, %v32
  %v35 = vmul.f32 %v15, %v32
  %v36 = vmul.f32 %v16, %v32
  %v37 = vmul.f32 %v17, %v32
  %v38 = vmul.f32 %v18, %v32
  %v39 = vmul.f32 %v19, %v32
  %v40 = vmul.f32 %v20, %v32
  %v41 = vmul.f32 %v21, %v32
  %v42 = vmul.f32 %v22, %v32
  %v43 = vmul.f32 %v23, %v32
  %v44 = vmul.f32 %v24, %v32
  %v45 = vmul.f32 %v25, %v32
  %v46 = vmul.f32 %v26, %v32
  %v47 = vmul.f32 %v27, %v32
  %v48 = vmul.f32 %v28, %v32
  %v49 = vmul.f32 %v29, %v32
  %v50 = vld [vmem:[%s2] sm:$0x1]
  %v52 = vperm.slane %v50, 0
  %v54 = vadd.f32 %v34, %v52
  %v55 = vadd.f32 %v35, %v52
  %v56 = vadd.f32 %v36, %v52
  %v57 = vadd.f32 %v37, %v52
  %v58 = vadd.f32 %v38, %v52
  %v59 = vadd.f32 %v39, %v52
  %v60 = vadd.f32 %v40, %v52
  %v61 = vadd.f32 %v41, %v52
  %v62 = vadd.f32 %v42, %v52
  %v63 = vadd.f32 %v43, %v52
  %v64 = vadd.f32 %v44, %v52
  %v65 = vadd.f32 %v45, %v52
  %v66 = vadd.f32 %v46, %v52
  %v67 = vadd.f32 %v47, %v52
  %v68 = vadd.f32 %v48, %v52
  %v69 = vadd.f32 %v49, %v52
  %70 = vst [vmem:[%s3] sm:$0xff] %v54
  %71 = vst [vmem:[%s3 + $0x8] sm:$0xff] %v55
  %72 = vst [vmem:[%s3 + $0x10] sm:$0xff] %v56
  %73 = vst [vmem:[%s3 + $0x18] sm:$0xff] %v57
  %74 = vst [vmem:[%s3 + $0x20] sm:$0xff] %v58
  %75 = vst [vmem:[%s3 + $0x28] sm:$0xff] %v59
  %76 = vst [vmem:[%s3 + $0x30] sm:$0xff] %v60
  %77 = vst [vmem:[%s3 + $0x38] sm:$0xff] %v61
  %78 = vst [vmem:[%s3 + $0x40] sm:$0xff] %v62
  %79 = vst [vmem:[%s3 + $0x48] sm:$0xff] %v63
  %80 = vst [vmem:[%s3 + $0x50] sm:$0xff] %v64
  %81 = vst [vmem:[%s3 + $0x58] sm:$0xff] %v65
  %82 = vst [vmem:[%s3 + $0x60] sm:$0xff] %v66
  %83 = vst [vmem:[%s3 + $0x68] sm:$0xff] %v67
  %84 = vst [vmem:[%s3 + $0x70] sm:$0xff] %v68
  %85 = vst [vmem:[%s3 + $0x78] sm:$0xff] %v69
  // Predicated region
  $region14: #{relu_conv_bn.3} parent=0 // pred_check
    _
  $region15: #{relu_conv_bn.3} parent=0 // pred_check_branch
    %87 = sbr.rel (0) target = $region17
  $region16: #{relu_conv_bn.3} parent=0 // pred_region
    _
  $region17: #{relu_conv_bn.3} parent=0 // pred_fallthru
    _
  // Predicated region
  $region18: #{relu_conv_bn.3} parent=0 // pred_check
    _
  $region19: #{relu_conv_bn.3} parent=0 // pred_check_branch
    %89 = sbr.rel (0) target = $region21
  $region20: #{relu_conv_bn.3} parent=0 // pred_region
    _
  $region21: #{relu_conv_bn.3} parent=0 // pred_fallthru
    _

</llo_original>
